<compile_context>
chip_gen: v6e
topology: v6e:2x2x1
jax: 0.10.0
libtpu: 0.0.40
codegen_flags: <defaults>
</compile_context>

<pallas_src>
import functools

import jax
import jax.numpy as jnp
from jax.experimental import pallas as pl
from jax.experimental.pallas import tpu as pltpu

N_LABELS = 5                       # fixed by the module's (1, 5) weights
EPSILON = 1e-07                    # module default
EX_PER_ROW = 128                   # examples packed per lane-dense row
LANE_WIDTH = N_LABELS * EX_PER_ROW # 640 lanes per packed row (multiple of 128)
MAX_TILE_ROWS = 512                # ~1.25 MiB f32 per input buffer


def _cdiv(a, b):
    return (a + b - 1) // b


def _round_up(a, b):
    return _cdiv(a, b) * b


# --------------------------------------------------------------------------- #
# Pallas kernel: fused weighted-CE terms + grid-accumulated scalar reduction   #
# --------------------------------------------------------------------------- #
def _wce_kernel(yt_ref, yp_ref, wp_ref, wn_ref, out_ref, acc_ref,
                *, n_examples, tile_rows, lane_width, needs_mask):
    g = pl.program_id(0)

    @pl.when(g == 0)
    def _init():
        acc_ref[...] = jnp.zeros_like(acc_ref)

    # Cast after the load so HBM traffic stays in the native input dtype.
    yt = yt_ref[...].astype(jnp.float32) + EPSILON        # (tile_rows, 640)
    yp = yp_ref[...].astype(jnp.float32) + EPSILON        # (tile_rows, 640)
    wp = wp_ref[...].astype(jnp.float32)                  # (1, 640) resident, lane-dense
    wn = wn_ref[...].astype(jnp.float32)                  # (1, 640)

    log_yp = jnp.log(yp)                                   # EUP
    term = (wp * yt) * log_yp \
         + (wn * (1.0 + EPSILON - yt)) * jnp.log(1.0 + EPSILON - log_yp)

    if needs_mask:
        # Padding only exists at the tail of the flattened (B*5,) element stream,
        # so validity is a single flat-index compare (no integer division needed).
        row = jax.lax.broadcasted_iota(jnp.int32, (tile_rows, lane_width), 0)
        col = jax.lax.broadcasted_iota(jnp.int32, (tile_rows, lane_width), 1)
        flat_idx = (g * tile_rows + row) * lane_width + col
        term = jnp.where(flat_idx < n_examples * N_LABELS, term, 0.0)

    # Pure VPU elementwise accumulation; no cross-lane reduce in the hot loop.
    acc_ref[...] = acc_ref[...] + term

    @pl.when(g == pl.num_programs(0) - 1)
    def _finalize():
        per_row = jnp.sum(acc_ref[...], axis=1, keepdims=True)   # (tile_rows, 1)  XLU once
        total = jnp.sum(per_row, axis=0, keepdims=True)          # (1, 1)
        out_ref[...] = total * (-1.0 / n_examples)                # fold -mean into the store


# --------------------------------------------------------------------------- #
# Wrapper: lane-dense repack + batch grid                                      #
# --------------------------------------------------------------------------- #
def multilabel_wce_loss(y_true, y_pred, positive_weights, negative_weights,
                        *, max_tile_rows=MAX_TILE_ROWS):
    """Pallas implementation of MultiLabelWCELoss.forward. Returns a scalar."""
    assert y_true.shape == y_pred.shape and y_true.shape[-1] == N_LABELS
    b = y_true.shape[0]
    n_elems = b * N_LABELS

    rows = _cdiv(b, EX_PER_ROW)                         # packed rows of 128 examples
    tile_rows = min(max_tile_rows, _round_up(rows, 8))  # (8,128)-aligned tile
    rows_padded = _round_up(rows, tile_rows)
    padded_elems = rows_padded * LANE_WIDTH
    needs_mask = padded_elems != n_elems

    def repack(x):
        flat = x.reshape(-1)                            # row-major reshape: free bitcast
        if needs_mask:
            flat = jnp.pad(flat, (0, padded_elems - n_elems))
        return flat.reshape(rows_padded, LANE_WIDTH)

    yt2 = repack(y_true)
    yp2 = repack(y_pred)
    # Tiny one-time tiling so per-step broadcast in the kernel is a no-op.
    wp2 = jnp.tile(positive_weights.reshape(1, N_LABELS), (1, EX_PER_ROW))
    wn2 = jnp.tile(negative_weights.reshape(1, N_LABELS), (1, EX_PER_ROW))

    kernel = functools.partial(
        _wce_kernel,
        n_examples=b,
        tile_rows=tile_rows,
        lane_width=LANE_WIDTH,
        needs_mask=needs_mask,
    )

    grid = (rows_padded // tile_rows,)
    out = pl.pallas_call(
        kernel,
        out_shape=jax.ShapeDtypeStruct((1, 1), jnp.float32),
        grid_spec=pltpu.PrefetchScalarGridSpec(
            num_scalar_prefetch=0,
            grid=grid,
            in_specs=[
                pl.BlockSpec((tile_rows, LANE_WIDTH), lambda g: (g, 0)),
                pl.BlockSpec((tile_rows, LANE_WIDTH), lambda g: (g, 0)),
                pl.BlockSpec((1, LANE_WIDTH), lambda g: (0, 0)),
                pl.BlockSpec((1, LANE_WIDTH), lambda g: (0, 0)),
            ],
            out_specs=pl.BlockSpec((1, 1), lambda g: (0, 0)),
            scratch_shapes=[pltpu.VMEM((tile_rows, LANE_WIDTH), jnp.float32)],
        ),
        compiler_params=pltpu.CompilerParams(
            dimension_semantics=("arbitrary",),      # reduction axis
            vmem_limit_bytes=32 * 1024 * 1024,       # fits v5e/v6e/v7x budgets for these tiles
        ),
    )(yt2, yp2, wp2, wn2)
    return out[0, 0]


# --------------------------------------------------------------------------- #
# Plain-JAX reference (same formula) for an in-script sanity check             #
# --------------------------------------------------------------------------- #
def _reference_loss(yt, yp, wp, wn):
    yt = yt + EPSILON
    yp = yp + EPSILON
    a1 = wp * yt
    b1 = jnp.log(yp)
    a2 = wn * (1.0 + EPSILON - yt)
    b2 = jnp.log(1.0 + EPSILON - jnp.log(yp))
    return jnp.mean(-jnp.sum(a1 * b1 + a2 * b2, axis=1))


if __name__ == "__main__":
    key = jax.random.PRNGKey(0)
    k1, k2, k3, k4 = jax.random.split(key, 4)

    # test=True branch of the module: weights = epsilon + rand((1, 5))
    wp = EPSILON + jax.random.uniform(k3, (1, N_LABELS), dtype=jnp.float32)
    wn = EPSILON + jax.random.uniform(k4, (1, N_LABELS), dtype=jnp.float32)

    loss_fn = jax.jit(multilabel_wce_loss, static_argnames=("max_tile_rows",))

    # Case 1: small batch (single tile, masked tail).
    B1 = 200
    y_true = jax.random.bernoulli(k1, 0.5, (B1, N_LABELS)).astype(jnp.float32)
    y_pred = jax.random.uniform(k2, (B1, N_LABELS), dtype=jnp.float32)
    loss = loss_fn(y_true, y_pred, wp, wn)
    jax.block_until_ready(loss)
    ref = _reference_loss(y_true, y_pred, wp, wn)
    assert jnp.allclose(loss, ref, rtol=1e-3, atol=1e-4), (float(loss), float(ref))

    # Case 2: slightly larger batch with a tiny tile cap to exercise the
    # multi-step grid accumulation path (3 grid steps, masked tail).
    B2 = 2123
    k5, k6 = jax.random.split(k1)
    y_true2 = jax.random.bernoulli(k5, 0.5, (B2, N_LABELS)).astype(jnp.float32)
    y_pred2 = jax.random.uniform(k6, (B2, N_LABELS), dtype=jnp.float32)
    loss2 = loss_fn(y_true2, y_pred2, wp, wn, max_tile_rows=8)
    jax.block_until_ready(loss2)
    ref2 = _reference_loss(y_true2, y_pred2, wp, wn)
    assert jnp.allclose(loss2, ref2, rtol=1e-3, atol=1e-4), (float(loss2), float(ref2))

    print("KERNEL_OK")
</pallas_src>

<mosaic_0001>
module attributes {stable_mosaic.version = 11 : i64} {
  func.func @_wce_kernel(%arg0: i32, %arg1: memref<8x640xf32, #tpu.memory_space<vmem>>, %arg2: memref<8x640xf32, #tpu.memory_space<vmem>>, %arg3: memref<1x640xf32, #tpu.memory_space<vmem>>, %arg4: memref<1x640xf32, #tpu.memory_space<vmem>>, %arg5: memref<1x1xf32, #tpu.memory_space<vmem>>, %arg6: memref<8x640xf32, #tpu.memory_space<vmem>>) attributes {dimension_semantics = [#tpu.dimension_semantics<arbitrary>], iteration_bounds = array<i64: 1>, scalar_prefetch = 0 : i64, scratch_operands = 1 : i64, tpu.core_type = #tpu.core_type<tc>, window_params = [{transform_indices = @transform_0, window_bounds = array<i64: 8, 640>}, {transform_indices = @transform_1, window_bounds = array<i64: 8, 640>}, {pipeline_mode = #tpu.pipeline_mode<synchronous>, transform_indices = @transform_2, window_bounds = array<i64: 1, 640>}, {pipeline_mode = #tpu.pipeline_mode<synchronous>, transform_indices = @transform_3, window_bounds = array<i64: 1, 640>}, {pipeline_mode = #tpu.pipeline_mode<synchronous>, transform_indices = @transform_4, window_bounds = array<i64: 1, 1>}]} {
    %c0_i32 = arith.constant 0 : i32
    %0 = arith.cmpi eq, %arg0, %c0_i32 : i32
    %1 = arith.extui %0 : i1 to i32
    %c0_i32_0 = arith.constant 0 : i32
    %2 = arith.cmpi ne, %1, %c0_i32_0 : i32
    scf.if %2 {
      %cst_18 = arith.constant 0.000000e+00 : f32
      %42 = vector.broadcast %cst_18 : f32 to vector<8x640xf32>
      %c0_19 = arith.constant 0 : index
      %c0_20 = arith.constant 0 : index
      %43 = vector.load %arg6[%c0_19, %c0_20] : memref<8x640xf32, #tpu.memory_space<vmem>>, vector<8x640xf32>
      tpu.vector_store %arg6[%c0_19, %c0_20], %42 {strides = array<i32>} : memref<8x640xf32, #tpu.memory_space<vmem>>, vector<8x640xf32>,
    } else {
    }
    %c0 = arith.constant 0 : index
    %c0_1 = arith.constant 0 : index
    %3 = vector.load %arg1[%c0, %c0_1] : memref<8x640xf32, #tpu.memory_space<vmem>>, vector<8x640xf32>
    %cst = arith.constant 1.000000e-07 : f32
    %4 = vector.broadcast %cst : f32 to vector<8x640xf32>
    %5 = arith.addf %3, %4 : vector<8x640xf32>
    %c0_2 = arith.constant 0 : index
    %c0_3 = arith.constant 0 : index
    %6 = vector.load %arg2[%c0_2, %c0_3] : memref<8x640xf32, #tpu.memory_space<vmem>>, vector<8x640xf32>
    %cst_4 = arith.constant 1.000000e-07 : f32
    %7 = vector.broadcast %cst_4 : f32 to vector<8x640xf32>
    %8 = arith.addf %6, %7 : vector<8x640xf32>
    %c0_5 = arith.constant 0 : index
    %c0_6 = arith.constant 0 : index
    %9 = vector.load %arg3[%c0_5, %c0_6] : memref<1x640xf32, #tpu.memory_space<vmem>>, vector<1x640xf32>
    %c0_7 = arith.constant 0 : index
    %c0_8 = arith.constant 0 : index
    %10 = vector.load %arg4[%c0_7, %c0_8] : memref<1x640xf32, #tpu.memory_space<vmem>>, vector<1x640xf32>
    %11 = math.log %8 : vector<8x640xf32>
    %12 = vector.broadcast %9 : vector<1x640xf32> to vector<8x640xf32>
    %13 = arith.mulf %12, %5 : vector<8x640xf32>
    %14 = arith.mulf %13, %11 : vector<8x640xf32>
    %cst_9 = arith.constant 1.00000012 : f32
    %15 = vector.broadcast %cst_9 : f32 to vector<8x640xf32>
    %16 = arith.subf %15, %5 : vector<8x640xf32>
    %17 = vector.broadcast %10 : vector<1x640xf32> to vector<8x640xf32>
    %18 = arith.mulf %17, %16 : vector<8x640xf32>
    %cst_10 = arith.constant 1.00000012 : f32
    %19 = vector.broadcast %cst_10 : f32 to vector<8x640xf32>
    %20 = arith.subf %19, %11 : vector<8x640xf32>
    %21 = math.log %20 : vector<8x640xf32>
    %22 = arith.mulf %18, %21 : vector<8x640xf32>
    %23 = arith.addf %14, %22 : vector<8x640xf32>
    %24 = tpu.iota {dimensions = array<i32: 0>} : vector<8x640xi32>
    %25 = tpu.iota {dimensions = array<i32: 1>} : vector<8x640xi32>
    %c8_i32 = arith.constant 8 : i32
    %26 = arith.muli %arg0, %c8_i32 : i32
    %27 = vector.broadcast %26 : i32 to vector<8x640xi32>
    %28 = arith.addi %27, %24 : vector<8x640xi32>
    %c640_i32 = arith.constant 640 : i32
    %29 = vector.broadcast %c640_i32 : i32 to vector<8x640xi32>
    %30 = arith.muli %28, %29 : vector<8x640xi32>
    %31 = arith.addi %30, %25 : vector<8x640xi32>
    %c1000_i32 = arith.constant 1000 : i32
    %32 = vector.broadcast %c1000_i32 : i32 to vector<8x640xi32>
    %33 = arith.cmpi slt, %31, %32 : vector<8x640xi32>
    %cst_11 = arith.constant 0.000000e+00 : f32
    %34 = vector.broadcast %cst_11 : f32 to vector<8x640xf32>
    %35 = arith.select %33, %23, %34 : vector<8x640xi1>, vector<8x640xf32>
    %c0_12 = arith.constant 0 : index
    %c0_13 = arith.constant 0 : index
    %36 = vector.load %arg6[%c0_12, %c0_13] : memref<8x640xf32, #tpu.memory_space<vmem>>, vector<8x640xf32>
    %37 = arith.addf %36, %35 : vector<8x640xf32>
    %c0_14 = arith.constant 0 : index
    %c0_15 = arith.constant 0 : index
    %38 = vector.load %arg6[%c0_14, %c0_15] : memref<8x640xf32, #tpu.memory_space<vmem>>, vector<8x640xf32>
    tpu.vector_store %arg6[%c0_14, %c0_15], %37 {strides = array<i32>} : memref<8x640xf32, #tpu.memory_space<vmem>>, vector<8x640xf32>,
    %c0_i32_16 = arith.constant 0 : i32
    %39 = arith.cmpi eq, %arg0, %c0_i32_16 : i32
    %40 = arith.extui %39 : i1 to i32
    %c0_i32_17 = arith.constant 0 : i32
    %41 = arith.cmpi ne, %40, %c0_i32_17 : i32
    scf.if %41 {
      %c0_18 = arith.constant 0 : index
      %c0_19 = arith.constant 0 : index
      %42 = vector.load %arg6[%c0_18, %c0_19] : memref<8x640xf32, #tpu.memory_space<vmem>>, vector<8x640xf32>
      %cst_20 = arith.constant dense<0.000000e+00> : vector<8xf32>
      %43 = vector.multi_reduction <add>, %42, %cst_20 [1] : vector<8x640xf32> to vector<8xf32>
      %44 = vector.shape_cast %43 : vector<8xf32> to vector<8x1xf32>
      %cst_21 = arith.constant dense<0.000000e+00> : vector<1xf32>
      %45 = vector.multi_reduction <add>, %44, %cst_21 [0] : vector<8x1xf32> to vector<1xf32>
      %46 = vector.shape_cast %45 : vector<1xf32> to vector<1x1xf32>
      %cst_22 = arith.constant -5.000000e-03 : f32
      %47 = vector.broadcast %cst_22 : f32 to vector<1x1xf32>
      %48 = arith.mulf %46, %47 : vector<1x1xf32>
      %c0_23 = arith.constant 0 : index
      %c0_24 = arith.constant 0 : index
      %49 = vector.load %arg5[%c0_23, %c0_24] : memref<1x1xf32, #tpu.memory_space<vmem>>, vector<1x1xf32>
      tpu.vector_store %arg5[%c0_23, %c0_24], %48 {strides = array<i32>} : memref<1x1xf32, #tpu.memory_space<vmem>>, vector<1x1xf32>,
    } else {
    }
    return
  }
  func.func @transform_0(%arg0: i32) -> (i32, i32) {
    %c0_i32 = arith.constant 0 : i32
    %c0_i32_0 = arith.constant 0 : i32
    return %arg0, %c0_i32 : i32, i32
  }
  func.func @transform_1(%arg0: i32) -> (i32, i32) {
    %c0_i32 = arith.constant 0 : i32
    %c0_i32_0 = arith.constant 0 : i32
    return %arg0, %c0_i32 : i32, i32
  }
  func.func @transform_2(%arg0: i32) -> (i32, i32) {
    %c0_i32 = arith.constant 0 : i32
    %c0_i32_0 = arith.constant 0 : i32
    %c0_i32_1 = arith.constant 0 : i32
    return %c0_i32, %c0_i32_0 : i32, i32
  }
  func.func @transform_3(%arg0: i32) -> (i32, i32) {
    %c0_i32 = arith.constant 0 : i32
    %c0_i32_0 = arith.constant 0 : i32
    %c0_i32_1 = arith.constant 0 : i32
    return %c0_i32, %c0_i32_0 : i32, i32
  }
  func.func @transform_4(%arg0: i32) -> (i32, i32) {
    %c0_i32 = arith.constant 0 : i32
    %c0_i32_0 = arith.constant 0 : i32
    %c0_i32_1 = arith.constant 0 : i32
    return %c0_i32, %c0_i32_0 : i32, i32
  }
}

</mosaic_0001>

<llo_original>
// kernel: multilabel_wce_loss.1
$region0: #{multilabel_wce_loss.1}
  #allocation0 [shape = 'u32[]', space=smem, size = 0x4, offset = 0x4, fixed_abs, tag = 'smem constant byte address 0x4 - core index']
  #allocation1 [shape = 'u32[144,128]{1,0:T(1,128)}', space=vmem, size = 0x12000, scoped, tag = 'internal scratch']
  #allocation2 [shape = 'f32[8,640]{1,0:T(8,128)}', space=vmem, size = 0x5000, scoped, tag = 'scratch operand']
  %s0 = inlined_call_operand.vmem [shape: f32[8,640], index: 0, kind: input, shape index: {}]
  %s1 = inlined_call_operand.vmem [shape: f32[8,640], index: 1, kind: input, shape index: {}]
  %s2 = inlined_call_operand.vmem [shape: f32[1,640], index: 2, kind: input, shape index: {}]
  %s3 = inlined_call_operand.vmem [shape: f32[1,640], index: 3, kind: input, shape index: {}]
  %s4 = inlined_call_operand.hbm [shape: f32[1,1], index: 4, kind: output, shape index: {}]
  %s5 = sld [smem:[#allocation0]]
  $region34: #{multilabel_wce_loss.1} parent=0
    _
  %s7 = ssub.s32 1, %s5
  %s8 = scalar_select 0, %s7, %s5
  $region1: #{multilabel_wce_loss.1} parent=0
    #allocation3 [shape = 'u8[512]{0}', space=vmem, size = 0x400, scoped, tag = 'output window, operand 0, single buffered']
    #allocation4 [shape = 's32[1]{0}', space=sflag, size = 0x4, scoped, tag = 'scoped memory for multilabel_wce_loss.1']
    %9 = vsyncpa [#allocation4], 0
    // Predicated region
    $region2: #{multilabel_wce_loss.1} parent=1 // pred_check
      _
    $region3: #{multilabel_wce_loss.1} parent=1 // pred_check_branch
      %11 = sbr.rel (0) target = $region5
    $region4: #{multilabel_wce_loss.1} parent=1 // pred_region
      _
    $region5: #{multilabel_wce_loss.1} parent=1 // pred_fallthru
      _
    // Predicated region
    $region6: #{multilabel_wce_loss.1} parent=1 // pred_check
      _
    $region7: #{multilabel_wce_loss.1} parent=1 // pred_check_branch
      %13 = sbr.rel (0) target = $region9
    $region8: #{multilabel_wce_loss.1} parent=1 // pred_region
      _
    $region9: #{multilabel_wce_loss.1} parent=1 // pred_fallthru
      _
    // Predicated region
    $region10: #{multilabel_wce_loss.1} parent=1 // pred_check
      _
    $region11: #{multilabel_wce_loss.1} parent=1 // pred_check_branch
      %15 = sbr.rel (0) target = $region13
    $region12: #{multilabel_wce_loss.1} parent=1 // pred_region
      _
    $region13: #{multilabel_wce_loss.1} parent=1 // pred_fallthru
      _
    // Predicated region
    $region14: #{multilabel_wce_loss.1} parent=1 // pred_check
      _
    $region15: #{multilabel_wce_loss.1} parent=1 // pred_check_branch
      %17 = sbr.rel (0) target = $region17
    $region16: #{multilabel_wce_loss.1} parent=1 // pred_region
      _
    $region17: #{multilabel_wce_loss.1} parent=1 // pred_fallthru
      _
    %p18 = scmp.eq.s32.totalorder 0, 0
    // Predicated region
    $region18: #{multilabel_wce_loss.1} parent=1 // pred_check
      %p19 = pneg %p18
    $region19: #{multilabel_wce_loss.1} parent=1 // pred_check_branch
      %21 = sbr.rel (%p19) target = $region21
    $region20: #{multilabel_wce_loss.1} parent=1 // pred_region
      %22 = vst [vmem:[#allocation2] sm:$0xff] 0.0
      %23 = vst [vmem:[#allocation2 + $0x8] sm:$0xff] 0.0
      %24 = vst [vmem:[#allocation2 + $0x10] sm:$0xff] 0.0
      %25 = vst [vmem:[#allocation2 + $0x18] sm:$0xff] 0.0
      %26 = vst [vmem:[#allocation2 + $0x20] sm:$0xff] 0.0
    $region21: #{multilabel_wce_loss.1} parent=1 // pred_fallthru
      _
    %v27 = vld [vmem:[%s0] sm:$0xff]
    %v28 = vld [vmem:[%s0 + $0x8] sm:$0xff]
    %v29 = vld [vmem:[%s0 + $0x10] sm:$0xff]
    %v30 = vld [vmem:[%s0 + $0x18] sm:$0xff]
    %v31 = vld [vmem:[%s0 + $0x20] sm:$0xff]
    %v32 = vadd.f32 %v27, 1e-07
    %v33 = vadd.f32 %v28, 1e-07
    %v34 = vadd.f32 %v29, 1e-07
    %v35 = vadd.f32 %v30, 1e-07
    %v36 = vadd.f32 %v31, 1e-07
    %v37 = vld [vmem:[%s1] sm:$0xff]
    %v38 = vld [vmem:[%s1 + $0x8] sm:$0xff]
    %v39 = vld [vmem:[%s1 + $0x10] sm:$0xff]
    %v40 = vld [vmem:[%s1 + $0x18] sm:$0xff]
    %v41 = vld [vmem:[%s1 + $0x20] sm:$0xff]
    %v42 = vadd.f32 %v37, 1e-07
    %v43 = vadd.f32 %v38, 1e-07
    %v44 = vadd.f32 %v39, 1e-07
    %v45 = vadd.f32 %v40, 1e-07
    %v46 = vadd.f32 %v41, 1e-07
    %v47 = vld [vmem:[%s2] sm:$0x1f]
    %v48 = vld [vmem:[%s3] sm:$0x1f]
    %v49 = vlog2.pop %v42
    %v50 = vmul.f32 %v49, 0.6931472
    %v51 = vlog2.pop %v43
    %v52 = vmul.f32 %v51, 0.6931472
    %v53 = vlog2.pop %v44
    %v54 = vmul.f32 %v53, 0.6931472
    %v55 = vlog2.pop %v45
    %v56 = vmul.f32 %v55, 0.6931472
    %v57 = vlog2.pop %v46
    %v58 = vmul.f32 %v57, 0.6931472
    %v60 = vlaneseq
    %v61 = vshrl.u32 %v60, 7
    %v62 = vsub.s32 0, %v61
    %v63 = vrot.slane %v47, %v62
    %v64 = vlaneseq
    %v65 = vshrl.u32 %v64, 7
    %v66 = vsub.s32 1, %v65
    %v67 = vrot.slane %v47, %v66
    %v68 = vlaneseq
    %v69 = vshrl.u32 %v68, 7
    %v70 = vsub.s32 2, %v69
    %v71 = vrot.slane %v47, %v70
    %v72 = vlaneseq
    %v73 = vshrl.u32 %v72, 7
    %v74 = vsub.s32 3, %v73
    %v75 = vrot.slane %v47, %v74
    %v76 = vlaneseq
    %v77 = vshrl.u32 %v76, 7
    %v78 = vsub.s32 4, %v77
    %v79 = vrot.slane %v47, %v78
    %v85 = vmul.f32 %v63, %v32
    %v86 = vmul.f32 %v67, %v33
    %v87 = vmul.f32 %v71, %v34
    %v88 = vmul.f32 %v75, %v35
    %v89 = vmul.f32 %v79, %v36
    %v90 = vmul.f32 %v85, %v50
    %v91 = vmul.f32 %v86, %v52
    %v92 = vmul.f32 %v87, %v54
    %v93 = vmul.f32 %v88, %v56
    %v94 = vmul.f32 %v89, %v58
    %v95 = vsub.f32 1.0000001, %v32
    %v96 = vsub.f32 1.0000001, %v33
    %v97 = vsub.f32 1.0000001, %v34
    %v98 = vsub.f32 1.0000001, %v35
    %v99 = vsub.f32 1.0000001, %v36
    %v101 = vlaneseq
    %v102 = vshrl.u32 %v101, 7
    %v103 = vsub.s32 0, %v102
    %v104 = vrot.slane %v48, %v103
    %v105 = vlaneseq
    %v106 = vshrl.u32 %v105, 7
    %v107 = vsub.s32 1, %v106
    %v108 = vrot.slane %v48, %v107
    %v109 = vlaneseq
    %v110 = vshrl.u32 %v109, 7
    %v111 = vsub.s32 2, %v110
    %v112 = vrot.slane %v48, %v111
    %v113 = vlaneseq
    %v114 = vshrl.u32 %v113, 7
    %v115 = vsub.s32 3, %v114
    %v116 = vrot.slane %v48, %v115
    %v117 = vlaneseq
    %v118 = vshrl.u32 %v117, 7
    %v119 = vsub.s32 4, %v118
    %v120 = vrot.slane %v48, %v119
    %v126 = vmul.f32 %v104, %v95
    %v127 = vmul.f32 %v108, %v96
    %v128 = vmul.f32 %v112, %v97
    %v129 = vmul.f32 %v116, %v98
    %v130 = vmul.f32 %v120, %v99
    %v131 = vsub.f32 1.0000001, %v50
    %v132 = vsub.f32 1.0000001, %v52
    %v133 = vsub.f32 1.0000001, %v54
    %v134 = vsub.f32 1.0000001, %v56
    %v135 = vsub.f32 1.0000001, %v58
    %v136 = vlog2.pop %v131
    %v137 = vmul.f32 %v136, 0.6931472
    %v138 = vlog2.pop %v132
    %v139 = vmul.f32 %v138, 0.6931472
    %v140 = vlog2.pop %v133
    %v141 = vmul.f32 %v140, 0.6931472
    %v142 = vlog2.pop %v134
    %v143 = vmul.f32 %v142, 0.6931472
    %v144 = vlog2.pop %v135
    %v145 = vmul.f32 %v144, 0.6931472
    %v146 = vmul.f32 %v126, %v137
    %v147 = vmul.f32 %v127, %v139
    %v148 = vmul.f32 %v128, %v141
    %v149 = vmul.f32 %v129, %v143
    %v150 = vmul.f32 %v130, %v145
    %v151 = vadd.f32 %v90, %v146
    %v152 = vadd.f32 %v91, %v147
    %v153 = vadd.f32 %v92, %v148
    %v154 = vadd.f32 %v93, %v149
    %v155 = vadd.f32 %v94, %v150
    %v156 = vlaneseq
    %v157 = vshrl.u32 %v156, 7
    %v158 = vlaneseq
    %v159 = vand.u32 %v158, 127
    %v160 = vadd.s32 %v159, 128
    %v161 = vadd.s32 %v159, 256
    %v162 = vadd.s32 %v159, 384
    %v163 = vadd.s32 %v159, 512
    %s164 = smul.u32 0, 8
    %v165 = vstv %s164
    %v166 = vadd.s32 %v165, %v157
    %v167 = vmul.u32 %v166, 640
    %v168 = vadd.s32 %v167, %v159
    %v169 = vadd.s32 %v167, %v160
    %v170 = vadd.s32 %v167, %v161
    %v171 = vadd.s32 %v167, %v162
    %v172 = vadd.s32 %v167, %v163
    %vm173 = vcmp.lt.s32.totalorder %v168, 1000
    %vm174 = vcmp.lt.s32.totalorder %v169, 1000
    %vm175 = vcmp.lt.s32.totalorder %v170, 1000
    %vm176 = vcmp.lt.s32.totalorder %v171, 1000
    %vm177 = vcmp.lt.s32.totalorder %v172, 1000
    %v178 = vsel %vm173, %v151, 0.0
    %v179 = vsel %vm174, %v152, 0.0
    %v180 = vsel %vm175, %v153, 0.0
    %v181 = vsel %vm176, %v154, 0.0
    %v182 = vsel %vm177, %v155, 0.0
    %v183 = vld [vmem:[#allocation2] sm:$0xff]
    %v184 = vld [vmem:[#allocation2 + $0x8] sm:$0xff]
    %v185 = vld [vmem:[#allocation2 + $0x10] sm:$0xff]
    %v186 = vld [vmem:[#allocation2 + $0x18] sm:$0xff]
    %v187 = vld [vmem:[#allocation2 + $0x20] sm:$0xff]
    %v188 = vadd.f32 %v183, %v178
    %v189 = vadd.f32 %v184, %v179
    %v190 = vadd.f32 %v185, %v180
    %v191 = vadd.f32 %v186, %v181
    %v192 = vadd.f32 %v187, %v182
    %193 = vst [vmem:[#allocation2] sm:$0xff] %v188
    %194 = vst [vmem:[#allocation2 + $0x8] sm:$0xff] %v189
    %195 = vst [vmem:[#allocation2 + $0x10] sm:$0xff] %v190
    %196 = vst [vmem:[#allocation2 + $0x18] sm:$0xff] %v191
    %197 = vst [vmem:[#allocation2 + $0x20] sm:$0xff] %v192
    // Predicated region
    $region22: #{multilabel_wce_loss.1} parent=1 // pred_check
      %p198 = pneg %p18
    $region23: #{multilabel_wce_loss.1} parent=1 // pred_check_branch
      %200 = sbr.rel (%p198) target = $region25
    $region24: #{multilabel_wce_loss.1} parent=1 // pred_region
      %v201 = vld [vmem:[#allocation2] sm:$0xff]
      %v202 = vld [vmem:[#allocation2 + $0x8] sm:$0xff]
      %v203 = vld [vmem:[#allocation2 + $0x10] sm:$0xff]
      %v204 = vld [vmem:[#allocation2 + $0x18] sm:$0xff]
      %v205 = vld [vmem:[#allocation2 + $0x20] sm:$0xff]
      %v206 = vadd.f32 %v201, %v202
      %v207 = vadd.f32 %v206, %v203
      %v208 = vadd.f32 %v207, %v204
      %v209 = vadd.f32 %v208, %v205
      %210 = vadd.xlane.f32.xlu0 %v209
      %v211 = vpop.xlane.xlu0 %210
      %v212 = vrot.slane %v211, 4
      %v213 = vadd.f32 %v211, %v212
      %v214 = vrot.slane %v213, 2
      %v215 = vadd.f32 %v213, %v214
      %v216 = vrot.slane %v215, 1
      %v217 = vadd.f32 %v215, %v216
      %v218 = vmul.f32 %v217, -0.005
      %vm219 = vcmask 0
      %220 = vst.msk [vmem:[#allocation3] sm:$0x1] %vm219, %v218
    $region25: #{multilabel_wce_loss.1} parent=1 // pred_fallthru
      _
    // Predicated region
    $region26: #{multilabel_wce_loss.1} parent=1 // pred_check
      _
    $region27: #{multilabel_wce_loss.1} parent=1 // pred_check_branch
      %222 = sbr.rel (0) target = $region29
    $region28: #{multilabel_wce_loss.1} parent=1 // pred_region
      %s224 = ssub.s32 16, 16
      %225 = vsyncadd [#allocation4], %s224
      %s227 = sshll.u32 [#allocation3], 4
      %s228 = int_to_ptr.vmem [resolvable:$true] %s227
      %230 = dma.vmem_to_hbm [thread:$0]  %s228, 16, %s4, [#allocation4]
    $region29: #{multilabel_wce_loss.1} parent=1 // pred_fallthru
      _
    // Predicated region
    $region30: #{multilabel_wce_loss.1} parent=1 // pred_check
      _
    $region31: #{multilabel_wce_loss.1} parent=1 // pred_check_branch
      %232 = sbr.rel (0) target = $region33
    $region32: #{multilabel_wce_loss.1} parent=1 // pred_region
      %233 = dma.done [#allocation4], 16
    $region33: #{multilabel_wce_loss.1} parent=1 // pred_fallthru
      _
    %234 = vsyncpa [#allocation4], 1

</llo_original>
